<compile_context>
chip_gen: v5e
topology: v5e:2x2
jax: 0.10.0
libtpu: 0.0.40
codegen_flags: <defaults>
</compile_context>

<pallas_src>
import functools
import math

import jax
import jax.numpy as jnp
from jax.experimental import pallas as pl
from jax.experimental.pallas import tpu as pltpu

F32 = jnp.float32
BF16 = jnp.bfloat16


def _round_up(x, m):
    return ((x + m - 1) // m) * m


def _node_pad(n):
    # always reserve >= 1 spare zero row so that -1 gather indices land on zeros
    return _round_up(max(n, 1) + 1, 8)


def _choose_row_tile(m):
    for t in (256, 128):
        if m % t == 0:
            return t, m
    mp = _round_up(max(m, 1), 8)
    tm = min(256, mp)
    mp = _round_up(mp, tm)
    return tm, mp


def _choose_k_tile(kp):
    for t in (512, 256, 128):
        if kp % t == 0:
            return t
    return kp  # kp is always a multiple of 128 in this module


def _pad_rows(x, rows):
    if x.shape[0] == rows:
        return x
    return jnp.zeros((rows,) + x.shape[1:], x.dtype).at[: x.shape[0]].set(x)


def _pad2d_bf16(x, rows, cols):
    r, c = x.shape
    if (r, c) == (rows, cols) and x.dtype == BF16:
        return x
    return jnp.zeros((rows, cols), BF16).at[:r, :c].set(x.astype(BF16))


# ----------------------------------------------------------------------------
# Plain linear (reducer, GAT transform, heads)
# ----------------------------------------------------------------------------
def _matmul_kernel(x_ref, w_ref, b_ref, o_ref, acc_ref, *, activation):
    """K-tiled matmul, f32 accumulator, bias + activation fused in the epilogue."""
    @pl.when(pl.program_id(1) == 0)
    def _():
        acc_ref[...] = jnp.zeros_like(acc_ref)

    acc_ref[...] += jnp.dot(x_ref[...], w_ref[...],
                            preferred_element_type=jnp.float32)

    @pl.when(pl.program_id(1) == pl.num_programs(1) - 1)
    def _():
        r = acc_ref[...] + b_ref[...]
        if activation == "relu":
            r = jnp.maximum(r, 0.0)
        elif activation == "sigmoid":
            r = jax.nn.sigmoid(r)
        o_ref[...] = r.astype(o_ref.dtype)


def pallas_linear(x, w_bf16, b_f32, activation="none", out_dtype=F32):
    """y = act(x @ w + b).  x is (padded to) bf16; w pre-padded (Kp, Np) bf16."""
    M, K = x.shape
    Kp, Np = w_bf16.shape
    tm, mp = _choose_row_tile(M)
    tk = _choose_k_tile(Kp)
    xp = _pad2d_bf16(x, mp, Kp)

    return pl.pallas_call(
        functools.partial(_matmul_kernel, activation=activation),
        out_shape=jax.ShapeDtypeStruct((mp, Np), out_dtype),
        grid=(mp // tm, Kp // tk),
        in_specs=[
            pl.BlockSpec((tm, tk), lambda i, k: (i, k)),
            pl.BlockSpec((tk, Np), lambda i, k: (k, 0)),
            pl.BlockSpec((1, Np), lambda i, k: (0, 0)),
        ],
        out_specs=pl.BlockSpec((tm, Np), lambda i, k: (i, 0)),
        scratch_shapes=[pltpu.VMEM((tm, Np), F32)],
        compiler_params=pltpu.CompilerParams(
            dimension_semantics=("parallel", "arbitrary")
        ),
    )(xp, w_bf16, b_f32)


# ----------------------------------------------------------------------------
# Fused EdgeConvRot: edge MLP + one-hot scatter aggregation + relu, one call
# ----------------------------------------------------------------------------
def _make_fused_conv_kernel(n_ns, n_es, n_pad, te):
    def kernel(*refs):
        it = iter(refs)
        dst_ref = next(it)
        xd, xs = [], []
        for _ in range(n_ns):
            xd.append(next(it)); xs.append(next(it))
        ea = [next(it) for _ in range(n_es)]
        w1, w2 = [], []
        for _ in range(n_ns):
            w1.append(next(it)); w2.append(next(it))
        w3 = [next(it) for _ in range(n_es)]
        b_ref = next(it)
        node_ref = next(it)
        edge_ref = next(it)
        acc_ref = next(it)

        k = pl.program_id(0)

        @pl.when(k == 0)
        def _():
            acc_ref[...] = jnp.zeros_like(acc_ref)

        # Edge MLP over the *virtual* concat [x_dst, x_src - x_dst, edge_attr]:
        #   e = sum_s x_dst_s @ (Wd_s - Wdiff_s) + x_src_s @ Wdiff_s
        #     + sum_t edge_attr_t @ We_t + b
        e = jnp.dot(xd[0][...], w1[0][...], preferred_element_type=jnp.float32)
        e = e + jnp.dot(xs[0][...], w2[0][...], preferred_element_type=jnp.float32)
        for s in range(1, n_ns):
            e = e + jnp.dot(xd[s][...], w1[s][...], preferred_element_type=jnp.float32)
            e = e + jnp.dot(xs[s][...], w2[s][...], preferred_element_type=jnp.float32)
        for s in range(n_es):
            e = e + jnp.dot(ea[s][...], w3[s][...], preferred_element_type=jnp.float32)
        e = e + b_ref[...]

        # Only the relu'd edge output ever hits HBM (bf16).
        edge_ref[...] = jnp.maximum(e, 0.0).astype(edge_ref.dtype)

        # Scatter-add the raw edge values into the resident node accumulator via
        # an on-the-fly (n_pad, te) one-hot.  n_pad is small (resident acc), so
        # the iota/compare costs only a couple of vregs.
        rows = jax.lax.broadcasted_iota(jnp.int32, (n_pad, te), 0)
        onehot = (rows == dst_ref[...]).astype(BF16)     # dst=-1 pads match nothing
        acc_ref[...] += jnp.dot(onehot, e.astype(BF16),
                                preferred_element_type=jnp.float32)

        @pl.when(k == pl.num_programs(0) - 1)
        def _():
            node_ref[...] = jnp.maximum(acc_ref[...], 0.0).astype(node_ref.dtype)

    return kernel


def fused_edge_conv(graph, node_segs, edge_segs, p):
    """One EdgeConvRot + sum aggregation + relu in a single pallas_call.

    node_segs: list of (n_pad, f_s) bf16 node-feature segments (virtual concat).
    edge_segs: list of (e_pad, f_t) bf16 edge-attr segments (virtual concat).
    Returns (relu(node_out) (n_pad, fo) bf16, relu(edge_out) (e_pad, fo) bf16).
    """
    n_pad, e_pad = graph["n_pad"], graph["e_pad"]
    n_ns, n_es = len(node_segs), len(edge_segs)
    fo = p["b"].shape[1]
    te = 256 if e_pad % 256 == 0 else 128

    inputs = [graph["dst_row"]]
    in_specs = [pl.BlockSpec((1, te), lambda k: (0, k))]
    # TODO(synk): node gathers x[src]/x[dst] are data-dependent rows and stay in eager JAX.
    for seg in node_segs:
        f = seg.shape[1]
        inputs += [seg[graph["dst_g"]], seg[graph["src_g"]]]
        in_specs += [pl.BlockSpec((te, f), lambda k: (k, 0)),
                     pl.BlockSpec((te, f), lambda k: (k, 0))]
    for seg in edge_segs:
        f = seg.shape[1]
        inputs += [seg]
        in_specs += [pl.BlockSpec((te, f), lambda k: (k, 0))]
    for s in range(n_ns):
        f = p["W1"][s].shape[0]
        inputs += [p["W1"][s], p["W2"][s]]
        in_specs += [pl.BlockSpec((f, fo), lambda k: (0, 0)),
                     pl.BlockSpec((f, fo), lambda k: (0, 0))]
    for s in range(n_es):
        f = p["W3"][s].shape[0]
        inputs += [p["W3"][s]]
        in_specs += [pl.BlockSpec((f, fo), lambda k: (0, 0))]
    inputs += [p["b"]]
    in_specs += [pl.BlockSpec((1, fo), lambda k: (0, 0))]

    node_out, edge_out = pl.pallas_call(
        _make_fused_conv_kernel(n_ns, n_es, n_pad, te),
        out_shape=(jax.ShapeDtypeStruct((n_pad, fo), BF16),
                   jax.ShapeDtypeStruct((e_pad, fo), BF16)),
        grid=(e_pad // te,),
        in_specs=in_specs,
        out_specs=(pl.BlockSpec((n_pad, fo), lambda k: (0, 0)),
                   pl.BlockSpec((te, fo), lambda k: (k, 0))),
        scratch_shapes=[pltpu.VMEM((n_pad, fo), F32)],
        compiler_params=pltpu.CompilerParams(
            dimension_semantics=("arbitrary",)),
    )(*inputs)
    return node_out, edge_out


# ----------------------------------------------------------------------------
# Graph glue (built once per graph, reused across all convs sharing it)
# ----------------------------------------------------------------------------
def build_graph_from_arrays(src, dst, num_nodes):
    src = src.astype(jnp.int32)
    dst = dst.astype(jnp.int32)
    e = int(src.shape[0])
    e_pad = _round_up(max(e, 1), 128)
    n_pad = _node_pad(num_nodes)
    src_g = jnp.full((e_pad,), -1, jnp.int32).at[:e].set(src)
    dst_g = jnp.full((e_pad,), -1, jnp.int32).at[:e].set(dst)
    return dict(src=src, dst=dst, src_g=src_g, dst_g=dst_g,
                dst_row=dst_g.reshape(1, e_pad),
                n=num_nodes, e=e, n_pad=n_pad, e_pad=e_pad)


def build_graph(edge_index, num_nodes):
    return build_graph_from_arrays(edge_index[0], edge_index[1], num_nodes)


def sag_pooling(x_pad, edge_attr_pad, graph, gat, ratio=0.5):
    """SAGPooling(GNN=GATConv), ratio=0.5, tanh gating (approximated semantics)."""
    N, E = graph["n"], graph["e"]
    # GAT linear transform on the MXU; attention/softmax scoring in eager glue.
    h = pallas_linear(x_pad, gat["W"], gat["b"], out_dtype=F32)[:N, 0]
    src, dst = graph["src"], graph["dst"]
    loops = jnp.arange(N, dtype=jnp.int32)
    srcl = jnp.concatenate([src, loops])
    dstl = jnp.concatenate([dst, loops])
    alpha = jax.nn.leaky_relu(gat["a_src"] * h[srcl] + gat["a_dst"] * h[dstl], 0.2)
    m = jnp.full((N,), -jnp.inf, F32).at[dstl].max(alpha)
    e = jnp.exp(alpha - m[dstl])
    denom = jnp.zeros((N,), F32).at[dstl].add(e)
    coef = e / denom[dstl]
    score = jnp.zeros((N,), F32).at[dstl].add(coef * h[srcl])

    k = int(math.ceil(ratio * N))
    perm = jnp.argsort(-score)[:k]          # glue: top-k (tie-break differs from torch.topk)
    x_pool = (x_pad[:N][perm].astype(F32) * jnp.tanh(score[perm])[:, None]).astype(BF16)

    keep = jnp.zeros((N,), bool).at[perm].set(True)
    emask = keep[src] & keep[dst]
    new_idx = jnp.full((N,), -1, jnp.int32).at[perm].set(jnp.arange(k, dtype=jnp.int32))
    src_p = new_idx[src[emask]]
    dst_p = new_idx[dst[emask]]
    eattr_p = edge_attr_pad[:E][emask]

    pgraph = build_graph_from_arrays(src_p, dst_p, k)
    x_pool_pad = _pad_rows(x_pool, pgraph["n_pad"])
    eattr_p_pad = _pad_rows(eattr_p, pgraph["e_pad"])
    return dict(graph=pgraph, x=x_pool_pad, edge_attr=eattr_p_pad, perm=perm, k=k)


# ----------------------------------------------------------------------------
# LevelFusion forward
# ----------------------------------------------------------------------------
def level_fusion_forward(prep, node_feat, edge_feat, edge_index):
    N = node_feat.shape[0]
    E = edge_index.shape[1]

    g = build_graph(edge_index, N)
    nf_in = _pad2d_bf16(node_feat, g["n_pad"], prep["in_node_pad"])
    ef_in = _pad2d_bf16(edge_feat, g["e_pad"], prep["in_edge_pad"])

    # reducer (no activation, as in the reference module)
    nf = pallas_linear(nf_in, prep["reducer"]["W"], prep["reducer"]["b"],
                       out_dtype=BF16)

    # conv1 / conv2 (fused edge-MLP + aggregation + relu)
    x1, e1 = fused_edge_conv(g, [nf], [ef_in], prep["conv1"])
    x2, e2 = fused_edge_conv(g, [x1], [e1], prep["conv2"])

    # conv3 applied twice with the same weights; concats are virtual (segments)
    x3, e3 = fused_edge_conv(g, [x2, x1], [e2, e1], prep["conv3"])
    x3, e3 = fused_edge_conv(g, [x3, x2], [e3, e2], prep["conv3"])

    # sub-branch: pre-conv -> SAGPooling -> conv on pooled graph
    x3s1, e3s1 = fused_edge_conv(g, [x3], [e3], prep["conv3_sub_pre"])
    pooled = sag_pooling(x3s1, e3s1, g, prep["sag_gat"], ratio=0.5)
    x3s2, _ = fused_edge_conv(pooled["graph"], [pooled["x"]],
                              [pooled["edge_attr"]], prep["conv3_sub1"])

    # x3_2[s1_to_ori] = x3[s1_to_ori] + x3_s2
    x3_2 = (x3.astype(F32)
              .at[pooled["perm"]].add(x3s2[: pooled["k"]].astype(F32))
              .astype(BF16))

    # conv4 ([x3_2, x3] virtual concat, edge attr = e3)
    x4, e4 = fused_edge_conv(g, [x3_2, x3], [e3], prep["conv4"])

    # heads (sigmoid fused into the matmul epilogue), slice away padding
    x = pallas_linear(x4, prep["lin1"]["W"], prep["lin1"]["b"],
                      activation="sigmoid", out_dtype=F32)[:N, :1]
    w = pallas_linear(e4, prep["w_lin"]["W"], prep["w_lin"]["b"],
                      activation="sigmoid", out_dtype=F32)[:E, :1]
    return x, w


# ----------------------------------------------------------------------------
# Parameters: reference (unpadded) construction + one-time padded/bf16 prep
# ----------------------------------------------------------------------------
def make_params(key, in_node_feat, in_edge_feat, nof=128):
    keys = iter(jax.random.split(key, 32))

    def lin(din, dout):
        return {"W": jax.random.normal(next(keys), (din, dout), F32) * 0.05,
                "b": jax.random.normal(next(keys), (dout,), F32) * 0.01}

    def econv(in_node, in_edge, out):
        return lin(2 * in_node + in_edge, out)

    params = {
        "reducer": lin(in_node_feat, nof),
        "conv1": econv(nof, in_edge_feat, nof),
        "conv2": econv(nof, nof, nof),
        "conv3": econv(2 * nof, 2 * nof, nof),
        # conv3b exists in __init__ but is never used in forward; omitted.
        "conv3_sub_pre": econv(nof, nof, 2 * nof),
        "conv3_sub1": econv(2 * nof, 2 * nof, nof),
        "conv4": econv(2 * nof, nof, nof),
        "lin1": lin(nof, 1),
        "w_lin": lin(nof, 1),
    }
    gat = lin(2 * nof, 1)
    gat["a_src"] = jnp.float32(0.3)
    gat["a_dst"] = jnp.float32(-0.2)
    params["sag_gat"] = gat
    return params


def _prep_linear(p):
    W, b = p["W"], p["b"]
    kp = _round_up(W.shape[0], 128)
    np_ = _round_up(W.shape[1], 128)
    Wp = jnp.zeros((kp, np_), BF16).at[: W.shape[0], : W.shape[1]].set(W.astype(BF16))
    bp = jnp.zeros((1, np_), F32).at[0, : b.shape[0]].set(b.astype(F32))
    return {"W": Wp, "b": bp}


def _prep_econv_split(p, node_seg_widths, edge_seg_widths):
    """Split W into per-segment slabs for the virtual-concat fused conv:
    W1_s multiplies x_dst seg s, W2_s multiplies x_src seg s, W3_t multiplies
    edge-attr seg t.  All slabs pre-padded bf16 (rows to 128, cols to 128)."""
    W, b = p["W"], p["b"]
    in_node = sum(node_seg_widths)
    out = W.shape[1]
    out_p = _round_up(out, 128)
    W_dst = W[:in_node]
    W_diff = W[in_node:2 * in_node]
    W_edge = W[2 * in_node:]
    W1 = W_dst - W_diff     # multiplies x_dst
    W2 = W_diff             # multiplies x_src

    def pad_seg(w):
        rows_p = _round_up(w.shape[0], 128)
        return jnp.zeros((rows_p, out_p), BF16).at[: w.shape[0], :out].set(
            w.astype(BF16))

    W1_segs, W2_segs = [], []
    off = 0
    for wd in node_seg_widths:
        W1_segs.append(pad_seg(W1[off:off + wd]))
        W2_segs.append(pad_seg(W2[off:off + wd]))
        off += wd
    W3_segs = []
    off = 0
    for wd in edge_seg_widths:
        W3_segs.append(pad_seg(W_edge[off:off + wd]))
        off += wd

    return {"W1": W1_segs, "W2": W2_segs, "W3": W3_segs,
            "b": jnp.zeros((1, out_p), F32).at[0, :out].set(b.astype(F32))}


def prepare_params(params, in_node_feat, in_edge_feat, nof=128):
    prep = {
        "nof": nof,
        "in_node_pad": _round_up(in_node_feat, 128),
        "in_edge_pad": _round_up(in_edge_feat, 128),
        "reducer": _prep_linear(params["reducer"]),
        "conv1": _prep_econv_split(params["conv1"], [nof], [in_edge_feat]),
        "conv2": _prep_econv_split(params["conv2"], [nof], [nof]),
        "conv3": _prep_econv_split(params["conv3"], [nof, nof], [nof, nof]),
        "conv3_sub_pre": _prep_econv_split(params["conv3_sub_pre"], [nof], [nof]),
        "conv3_sub1": _prep_econv_split(params["conv3_sub1"], [2 * nof], [2 * nof]),
        "conv4": _prep_econv_split(params["conv4"], [nof, nof], [nof]),
        "lin1": _prep_linear(params["lin1"]),
        "w_lin": _prep_linear(params["w_lin"]),
    }
    gat = _prep_linear(params["sag_gat"])
    gat["a_src"] = params["sag_gat"]["a_src"]
    gat["a_dst"] = params["sag_gat"]["a_dst"]
    prep["sag_gat"] = gat
    return prep


# ----------------------------------------------------------------------------
if __name__ == "__main__":
    key = jax.random.PRNGKey(0)
    k_param, k_node, k_edge = jax.random.split(key, 3)

    num_nodes = 10
    in_node_feat = 16
    in_edge_feat = 8

    # fully connected directed graph (no self loops) -> E = 90
    pairs = [(i, j) for i in range(num_nodes) for j in range(num_nodes) if i != j]
    edge_index = jnp.array(pairs, dtype=jnp.int32).T            # (2, E)
    num_edges = edge_index.shape[1]

    node_feat = jax.random.normal(k_node, (num_nodes, in_node_feat), F32)
    edge_feat = jax.random.normal(k_edge, (num_edges, in_edge_feat), F32)

    params = make_params(k_param, in_node_feat, in_edge_feat)
    prep = prepare_params(params, in_node_feat, in_edge_feat)

    x, w = level_fusion_forward(prep, node_feat, edge_feat, edge_index)
    jax.block_until_ready((x, w))

    assert x.shape == (num_nodes, 1) and w.shape == (num_edges, 1)
    assert bool(jnp.all(jnp.isfinite(x))) and bool(jnp.all(jnp.isfinite(w)))
    print("KERNEL_OK")
</pallas_src>

<mosaic_0001>
module attributes {stable_mosaic.version = 11 : i64} {
  func.func @_matmul_kernel(%arg0: i32, %arg1: i32, %arg2: memref<16x128xbf16, #tpu.memory_space<vmem>>, %arg3: memref<128x128xbf16, #tpu.memory_space<vmem>>, %arg4: memref<1x128xf32, #tpu.memory_space<vmem>>, %arg5: memref<16x128xbf16, #tpu.memory_space<vmem>>, %arg6: memref<16x128xf32, #tpu.memory_space<vmem>>) attributes {dimension_semantics = [#tpu.dimension_semantics<parallel>, #tpu.dimension_semantics<arbitrary>], iteration_bounds = array<i64: 1, 1>, scalar_prefetch = 0 : i64, scratch_operands = 1 : i64, tpu.core_type = #tpu.core_type<tc>, window_params = [{transform_indices = @transform_0, window_bounds = array<i64: 16, 128>}, {transform_indices = @transform_1, window_bounds = array<i64: 128, 128>}, {pipeline_mode = #tpu.pipeline_mode<synchronous>, transform_indices = @transform_2, window_bounds = array<i64: 1, 128>}, {transform_indices = @transform_3, window_bounds = array<i64: 16, 128>}]} {
    %c0_i32 = arith.constant 0 : i32
    %0 = arith.cmpi eq, %arg1, %c0_i32 : i32
    %1 = arith.extui %0 : i1 to i32
    %c0_i32_0 = arith.constant 0 : i32
    %2 = arith.cmpi ne, %1, %c0_i32_0 : i32
    scf.if %2 {
      %cst_10 = arith.constant 0.000000e+00 : f32
      %12 = vector.broadcast %cst_10 : f32 to vector<16x128xf32>
      %c0_11 = arith.constant 0 : index
      %c0_12 = arith.constant 0 : index
      %13 = vector.load %arg6[%c0_11, %c0_12] : memref<16x128xf32, #tpu.memory_space<vmem>>, vector<16x128xf32>
      tpu.vector_store %arg6[%c0_11, %c0_12], %12 {strides = array<i32>} : memref<16x128xf32, #tpu.memory_space<vmem>>, vector<16x128xf32>,
    } else {
    }
    %c0 = arith.constant 0 : index
    %c0_1 = arith.constant 0 : index
    %3 = vector.load %arg6[%c0, %c0_1] : memref<16x128xf32, #tpu.memory_space<vmem>>, vector<16x128xf32>
    %c0_2 = arith.constant 0 : index
    %c0_3 = arith.constant 0 : index
    %4 = vector.load %arg2[%c0_2, %c0_3] : memref<16x128xbf16, #tpu.memory_space<vmem>>, vector<16x128xbf16>
    %c0_4 = arith.constant 0 : index
    %c0_5 = arith.constant 0 : index
    %5 = vector.load %arg3[%c0_4, %c0_5] : memref<128x128xbf16, #tpu.memory_space<vmem>>, vector<128x128xbf16>
    %cst = arith.constant dense<0.000000e+00> : vector<16x128xf32>
    %6 = tpu.matmul %4, %5, %cst {dimension_numbers = #tpu.dot_dimension_numbers<[1], [0], [0], [1], [0, 0, 1, 1], [], []>} : vector<16x128xbf16>, vector<128x128xbf16>, vector<16x128xf32> -> vector<16x128xf32>
    %7 = arith.addf %3, %6 : vector<16x128xf32>
    %c0_6 = arith.constant 0 : index
    %c0_7 = arith.constant 0 : index
    %8 = vector.load %arg6[%c0_6, %c0_7] : memref<16x128xf32, #tpu.memory_space<vmem>>, vector<16x128xf32>
    tpu.vector_store %arg6[%c0_6, %c0_7], %7 {strides = array<i32>} : memref<16x128xf32, #tpu.memory_space<vmem>>, vector<16x128xf32>,
    %c0_i32_8 = arith.constant 0 : i32
    %9 = arith.cmpi eq, %arg1, %c0_i32_8 : i32
    %10 = arith.extui %9 : i1 to i32
    %c0_i32_9 = arith.constant 0 : i32
    %11 = arith.cmpi ne, %10, %c0_i32_9 : i32
    scf.if %11 {
      %c0_10 = arith.constant 0 : index
      %c0_11 = arith.constant 0 : index
      %12 = vector.load %arg6[%c0_10, %c0_11] : memref<16x128xf32, #tpu.memory_space<vmem>>, vector<16x128xf32>
      %c0_12 = arith.constant 0 : index
      %c0_13 = arith.constant 0 : index
      %13 = vector.load %arg4[%c0_12, %c0_13] : memref<1x128xf32, #tpu.memory_space<vmem>>, vector<1x128xf32>
      %14 = vector.broadcast %13 : vector<1x128xf32> to vector<16x128xf32>
      %15 = arith.addf %12, %14 : vector<16x128xf32>
      %16 = arith.truncf %15 : vector<16x128xf32> to vector<16x128xbf16>
      %c0_14 = arith.constant 0 : index
      %c0_15 = arith.constant 0 : index
      %17 = vector.load %arg5[%c0_14, %c0_15] : memref<16x128xbf16, #tpu.memory_space<vmem>>, vector<16x128xbf16>
      tpu.vector_store %arg5[%c0_14, %c0_15], %16 {strides = array<i32>} : memref<16x128xbf16, #tpu.memory_space<vmem>>, vector<16x128xbf16>,
    } else {
    }
    return
  }
  func.func @transform_0(%arg0: i32, %arg1: i32) -> (i32, i32) {
    %c0_i32 = arith.constant 0 : i32
    return %arg0, %arg1 : i32, i32
  }
  func.func @transform_1(%arg0: i32, %arg1: i32) -> (i32, i32) {
    %c0_i32 = arith.constant 0 : i32
    %c0_i32_0 = arith.constant 0 : i32
    return %arg1, %c0_i32 : i32, i32
  }
  func.func @transform_2(%arg0: i32, %arg1: i32) -> (i32, i32) {
    %c0_i32 = arith.constant 0 : i32
    %c0_i32_0 = arith.constant 0 : i32
    %c0_i32_1 = arith.constant 0 : i32
    return %c0_i32, %c0_i32_0 : i32, i32
  }
  func.func @transform_3(%arg0: i32, %arg1: i32) -> (i32, i32) {
    %c0_i32 = arith.constant 0 : i32
    %c0_i32_0 = arith.constant 0 : i32
    return %arg0, %c0_i32 : i32, i32
  }
}

</mosaic_0001>

<llo_original>
// kernel: tpu_custom_call.1
$region0: #{tpu_custom_call.1}
  #allocation0 [shape = 'u32[]', space=smem, size = 0x4, offset = 0x4, fixed_abs, tag = 'smem constant byte address 0x4 - core index']
  #allocation1 [shape = 'u32[72,128]{1,0:T(1,128)}', space=vmem, size = 0x9000, scoped, tag = 'internal scratch']
  #allocation2 [shape = 'f32[16,128]{1,0:T(8,128)}', space=vmem, size = 0x2000, scoped, tag = 'scratch operand']
  %s0 = inlined_call_operand.hbm [shape: bf16[16,128], index: 0, kind: input, shape index: {}]
  %s1 = inlined_call_operand.hbm [shape: bf16[128,128], index: 1, kind: input, shape index: {}]
  %s2 = inlined_call_operand.vmem [shape: f32[1,128], index: 2, kind: input, shape index: {}]
  %s3 = inlined_call_operand.hbm [shape: bf16[16,128], index: 3, kind: output, shape index: {}]
  %s4 = sld [smem:[#allocation0]]
  $region38: #{tpu_custom_call.1} parent=0
    _
  %s6 = ssub.s32 1, %s4
  %s7 = scalar_select 0, %s6, %s4
  $region1: #{tpu_custom_call.1} parent=0
    #allocation3 [shape = 'u8[4096]{0}', space=vmem, size = 0x1000, scoped, tag = 'input window, operand 0, single buffered']
    #allocation4 [shape = 's32[1]{0}', space=sflag, size = 0x4, scoped, tag = 'scoped memory for tpu_custom_call.1']
    #allocation5 [shape = 's32[1]{0}', space=sflag, size = 0x4, scoped, tag = 'scoped memory for tpu_custom_call.1']
    #allocation6 [shape = 'u8[32768]{0}', space=vmem, size = 0x8000, scoped, tag = 'input window, operand 1, single buffered']
    #allocation7 [shape = 's32[1]{0}', space=sflag, size = 0x4, scoped, tag = 'scoped memory for tpu_custom_call.1']
    #allocation8 [shape = 'u8[4096]{0}', space=vmem, size = 0x1000, scoped, tag = 'output window, operand 0, single buffered']
    %8 = vsyncpa [#allocation4], 0
    %9 = vsyncpa [#allocation7], 0
    %10 = vsyncpa [#allocation5], 0
    // Predicated region
    $region2: #{tpu_custom_call.1} parent=1 // pred_check
      _
    $region3: #{tpu_custom_call.1} parent=1 // pred_check_branch
      %12 = sbr.rel (0) target = $region5
    $region4: #{tpu_custom_call.1} parent=1 // pred_region
      %14 = vsyncadd [#allocation4], 0
      %s15 = sshll.u32 %s0, 4
      %s16 = int_to_ptr.hbm [resolvable:$true] %s15
      %s17 = sshll.u32 [#allocation3], 4
      %s18 = int_to_ptr.vmem [resolvable:$true] %s17
      %23 = dma.hbm_to_vmem [thread:$0]  %s16, 128, %s18, [#allocation4], 64, 64, 4
    $region5: #{tpu_custom_call.1} parent=1 // pred_fallthru
      _
    // Predicated region
    $region6: #{tpu_custom_call.1} parent=1 // pred_check
      _
    $region7: #{tpu_custom_call.1} parent=1 // pred_check_branch
      %25 = sbr.rel (0) target = $region9
    $region8: #{tpu_custom_call.1} parent=1 // pred_region
      %27 = vsyncadd [#allocation7], 0
      %s28 = sshll.u32 %s1, 4
      %s29 = int_to_ptr.hbm [resolvable:$true] %s28
      %s30 = sshll.u32 [#allocation6], 4
      %s31 = int_to_ptr.vmem [resolvable:$true] %s30
      %36 = dma.hbm_to_vmem [thread:$0]  %s29, 1024, %s31, [#allocation7], 64, 64, 4
    $region9: #{tpu_custom_call.1} parent=1 // pred_fallthru
      _
    // Predicated region
    $region10: #{tpu_custom_call.1} parent=1 // pred_check
      _
    $region11: #{tpu_custom_call.1} parent=1 // pred_check_branch
      %38 = sbr.rel (0) target = $region13
    $region12: #{tpu_custom_call.1} parent=1 // pred_region
      _
    $region13: #{tpu_custom_call.1} parent=1 // pred_fallthru
      _
    // Predicated region
    $region14: #{tpu_custom_call.1} parent=1 // pred_check
      _
    $region15: #{tpu_custom_call.1} parent=1 // pred_check_branch
      %40 = sbr.rel (0) target = $region17
    $region16: #{tpu_custom_call.1} parent=1 // pred_region
      %42 = dma.done [#allocation4], 128
    $region17: #{tpu_custom_call.1} parent=1 // pred_fallthru
      _
    // Predicated region
    $region18: #{tpu_custom_call.1} parent=1 // pred_check
      _
    $region19: #{tpu_custom_call.1} parent=1 // pred_check_branch
      %44 = sbr.rel (0) target = $region21
    $region20: #{tpu_custom_call.1} parent=1 // pred_region
      %46 = dma.done [#allocation7], 1024
    $region21: #{tpu_custom_call.1} parent=1 // pred_fallthru
      _
    %p47 = scmp.eq.s32.totalorder 0, 0
    // Predicated region
    $region22: #{tpu_custom_call.1} parent=1 // pred_check
      %p48 = pneg %p47
    $region23: #{tpu_custom_call.1} parent=1 // pred_check_branch
      %50 = sbr.rel (%p48) target = $region25
    $region24: #{tpu_custom_call.1} parent=1 // pred_region
      %51 = vst [vmem:[#allocation2] sm:$0xff] 0.0
      %52 = vst [vmem:[#allocation2 + $0x8] sm:$0xff] 0.0
    $region25: #{tpu_custom_call.1} parent=1 // pred_fallthru
      _
    %v53 = vld [vmem:[#allocation2] sm:$0xff]
    %v54 = vld [vmem:[#allocation2 + $0x8] sm:$0xff]
    %v55 = vld [vmem:[#allocation3] sm:$0xf]
    %v56 = vld [vmem:[#allocation3 + $0x4] sm:$0xf]
    %v57 = vld [vmem:[#allocation6] sm:$0xf]
    %v58 = vld [vmem:[#allocation6 + $0x4] sm:$0xf]
    %v59 = vld [vmem:[#allocation6 + $0x8] sm:$0xf]
    %v60 = vld [vmem:[#allocation6 + $0xc] sm:$0xf]
    %v61 = vld [vmem:[#allocation6 + $0x10] sm:$0xf]
    %v62 = vld [vmem:[#allocation6 + $0x14] sm:$0xf]
    %v63 = vld [vmem:[#allocation6 + $0x18] sm:$0xf]
    %v64 = vld [vmem:[#allocation6 + $0x1c] sm:$0xf]
    %v65 = vld [vmem:[#allocation6 + $0x20] sm:$0xf]
    %v66 = vld [vmem:[#allocation6 + $0x24] sm:$0xf]
    %v67 = vld [vmem:[#allocation6 + $0x28] sm:$0xf]
    %v68 = vld [vmem:[#allocation6 + $0x2c] sm:$0xf]
    %v69 = vld [vmem:[#allocation6 + $0x30] sm:$0xf]
    %v70 = vld [vmem:[#allocation6 + $0x34] sm:$0xf]
    %v71 = vld [vmem:[#allocation6 + $0x38] sm:$0xf]
    %v72 = vld [vmem:[#allocation6 + $0x3c] sm:$0xf]
    %v75 = vunpack.c.l.b16 %v55
    %v76 = vunpack.c.l.b16 %v56
    %v77 = vpack.c.b16 %v76, %v75
    %v95 = vunpack.c.l.b16 %v57
    %v96 = vunpack.c.l.b16 %v58
    %v97 = vunpack.c.l.b16 %v59
    %v98 = vunpack.c.l.b16 %v60
    %v99 = vunpack.c.l.b16 %v61
    %v100 = vunpack.c.l.b16 %v62
    %v101 = vunpack.c.l.b16 %v63
    %v102 = vunpack.c.l.b16 %v64
    %v103 = vunpack.c.l.b16 %v65
    %v104 = vunpack.c.l.b16 %v66
    %v105 = vunpack.c.l.b16 %v67
    %v106 = vunpack.c.l.b16 %v68
    %v107 = vunpack.c.l.b16 %v69
    %v108 = vunpack.c.l.b16 %v70
    %v109 = vunpack.c.l.b16 %v71
    %v110 = vunpack.c.l.b16 %v72
    %v111 = vpack.c.b16 %v96, %v95
    %v112 = vpack.c.b16 %v98, %v97
    %v113 = vpack.c.b16 %v100, %v99
    %v114 = vpack.c.b16 %v102, %v101
    %v115 = vpack.c.b16 %v104, %v103
    %v116 = vpack.c.b16 %v106, %v105
    %v117 = vpack.c.b16 %v108, %v107
    %v118 = vpack.c.b16 %v110, %v109
    %127 = vmatpush.bf16.msra.mxu0 %v118
    %128 = vmatpush.bf16.msra.mxu0 %v117
    %129 = vmatpush.bf16.msra.mxu0 %v116
    %130 = vmatpush.bf16.msra.mxu0 %v115
    %131 = vmatpush.bf16.msra.mxu0 %v114
    %132 = vmatpush.bf16.msra.mxu0 %v113
    %133 = vmatpush.bf16.msra.mxu0 %v112
    %134 = vmatpush.bf16.msra.mxu0 %v111
    %135 = vmatmul.bf16.gmra.mxu0 %v77
    %v136 = vpop.f32.mrf.mxu0
    %v137 = vadd.f32 0.0, %v136
    %v138 = vpop.f32.mrf.mxu0
    %v139 = vadd.f32 0.0, %v138
    %140 = vdwg.mxu0
    %v141 = vadd.f32 %v53, %v137
    %v142 = vadd.f32 %v54, %v139
    %143 = vst [vmem:[#allocation2] sm:$0xff] %v141
    %144 = vst [vmem:[#allocation2 + $0x8] sm:$0xff] %v142
    // Predicated region
    $region26: #{tpu_custom_call.1} parent=1 // pred_check
      %p145 = pneg %p47
    $region27: #{tpu_custom_call.1} parent=1 // pred_check_branch
      %147 = sbr.rel (%p145) target = $region29
    $region28: #{tpu_custom_call.1} parent=1 // pred_region
      %v148 = vld [vmem:[#allocation2] sm:$0xff]
      %v149 = vld [vmem:[#allocation2 + $0x8] sm:$0xff]
      %v150 = vld [vmem:[%s2] sm:$0x1]
      %v152 = vperm.slane %v150, 0
      %v154 = vadd.f32 %v148, %v152
      %v155 = vadd.f32 %v149, %v152
      %v156 = vpack.c.bf16 %v154, %v154
      %v157 = vpack.c.bf16 %v155, %v155
      %158 = vst [vmem:[#allocation8] sm:$0xf] %v156
      %159 = vst [vmem:[#allocation8 + $0x4] sm:$0xf] %v157
    $region29: #{tpu_custom_call.1} parent=1 // pred_fallthru
      _
    // Predicated region
    $region30: #{tpu_custom_call.1} parent=1 // pred_check
      _
    $region31: #{tpu_custom_call.1} parent=1 // pred_check_branch
      %161 = sbr.rel (0) target = $region33
    $region32: #{tpu_custom_call.1} parent=1 // pred_region
      %163 = vsyncadd [#allocation5], 0
      %s164 = sshll.u32 [#allocation8], 4
      %s165 = int_to_ptr.vmem [resolvable:$true] %s164
      %s166 = sshll.u32 %s3, 4
      %s167 = int_to_ptr.hbm [resolvable:$true] %s166
      %172 = dma.vmem_to_hbm [thread:$0]  %s165, 128, %s167, [#allocation5], 64, 64, 4
    $region33: #{tpu_custom_call.1} parent=1 // pred_fallthru
      _
    // Predicated region
    $region34: #{tpu_custom_call.1} parent=1 // pred_check
      _
    $region35: #{tpu_custom_call.1} parent=1 // pred_check_branch
      %174 = sbr.rel (0) target = $region37
    $region36: #{tpu_custom_call.1} parent=1 // pred_region
      %176 = dma.done [#allocation5], 128
    $region37: #{tpu_custom_call.1} parent=1 // pred_fallthru
      _
    %177 = vsyncpa [#allocation4], 1
    %178 = vsyncpa [#allocation7], 1
    %179 = vsyncpa [#allocation5], 1

</llo_original>
